<compile_context>
chip_gen: v6e
topology: v6e:2x2x1
jax: 0.10.0
libtpu: 0.0.40
codegen_flags: <defaults>
</compile_context>

<pallas_src>
import functools

import jax
import jax.numpy as jnp
from jax import lax
from jax.experimental import pallas as pl
from jax.experimental.pallas import tpu as pltpu

LEAKY_SLOPE = 0.01   # nn.LeakyReLU default negative_slope
LN_EPS = 1e-5        # nn.LayerNorm default eps
LANE = 128           # TPU lane width
SUBLANE = 16         # bf16-safe sublane multiple (also satisfies f32's 8)


def _round_up(x, m):
    return (x + m - 1) // m * m


# ---------------------------------------------------------------------------
# Kernels
# ---------------------------------------------------------------------------

def _ln_epilogue(y, lnp_ref, *, inv_n):
    """LayerNorm over the real n_out features.  y: (blk, n_out_p) f32.

    Padded lanes of y are exactly zero (zero-padded weight columns / bias
    lanes) and gamma/beta padded lanes are zero, so no lane mask is needed:
    full-lane sums equal sums over the real features and padded output lanes
    come out as exactly 0.
    """
    b2 = lnp_ref[0:1, :]
    gamma = lnp_ref[1:2, :]
    beta = lnp_ref[2:3, :]
    y = y + b2
    s1 = jnp.sum(y, axis=-1, keepdims=True)        # two independent XLU
    s2 = jnp.sum(y * y, axis=-1, keepdims=True)    # reductions -> overlap
    mean = s1 * inv_n
    var = s2 * inv_n - mean * mean
    scale = lax.rsqrt(var + LN_EPS)                # EUP slot, effectively free
    return (y - mean) * scale * gamma + beta


def _rb_kernel(x_ref, w1_ref, b1_ref, w2_ref, lnp_ref, o_ref, *, inv_n):
    # fc1 on the MXU (bf16 operands when use_bf16, f32 accumulation).
    h = jnp.dot(x_ref[...], w1_ref[...], preferred_element_type=jnp.float32)
    h = h + b1_ref[...]
    h = jnp.maximum(h, LEAKY_SLOPE * h)            # LeakyReLU: mul + max only
    y = jnp.dot(h.astype(w2_ref.dtype), w2_ref[...],
                preferred_element_type=jnp.float32)
    o_ref[...] = _ln_epilogue(y, lnp_ref, inv_n=inv_n).astype(o_ref.dtype)


def _rb_kernel_hsplit(x_ref, w1_ref, b1_ref, w2_ref, lnp_ref, o_ref, acc_ref,
                      *, inv_n):
    """Hidden-dim-split variant: grid = (batch tiles, hidden tiles)."""
    h_idx = pl.program_id(1)

    @pl.when(h_idx == 0)
    def _():
        acc_ref[...] = jnp.zeros_like(acc_ref)

    h = jnp.dot(x_ref[...], w1_ref[...], preferred_element_type=jnp.float32)
    h = h + b1_ref[...]
    h = jnp.maximum(h, LEAKY_SLOPE * h)
    acc_ref[...] += jnp.dot(h.astype(w2_ref.dtype), w2_ref[...],
                            preferred_element_type=jnp.float32)

    @pl.when(h_idx == pl.num_programs(1) - 1)
    def _():
        o_ref[...] = _ln_epilogue(acc_ref[...], lnp_ref,
                                  inv_n=inv_n).astype(o_ref.dtype)


# ---------------------------------------------------------------------------
# Wrapper
# ---------------------------------------------------------------------------

@functools.partial(
    jax.jit,
    static_argnames=("block_b", "use_bf16", "hidden_block", "out_dtype",
                     "use_buffered"))
def _recurrent_block_impl(x, w1, b1, w2, b2, gamma, beta, *, block_b, use_bf16,
                          hidden_block, out_dtype, use_buffered):
    B, n_in = x.shape
    n_hid = w1.shape[1]
    n_out = w2.shape[1]
    assert n_out == n_hid, (
        "LayerNorm(n_hidden) on fc2's output requires n_output == n_hidden")

    odt = jnp.dtype(x.dtype) if out_dtype is None else jnp.dtype(out_dtype)
    cdt = jnp.bfloat16 if use_bf16 else jnp.float32
    c_isz = jnp.dtype(cdt).itemsize
    o_isz = jnp.dtype(odt).itemsize

    # Lane-dense feature padding (padded entries exactly zero -> inert).
    n_in_p = _round_up(n_in, LANE)
    n_hid_p = _round_up(n_hid, LANE)
    n_out_p = _round_up(n_out, LANE)

    # Batch tiling: keep tiles large, but make the grid at least 2 steps when
    # the batch allows it so the "parallel" axis can shard across v7x's 2 TCs.
    if B >= 2 * SUBLANE:
        half = _round_up((B + 1) // 2, SUBLANE)
        blk = min(_round_up(block_b, SUBLANE), half)
    else:
        blk = _round_up(max(B, 1), SUBLANE)
    blk = max(blk, SUBLANE)
    B_p = _round_up(B, blk)

    # Chip-aware VMEM budget (v5e/v6e: 128 MiB physical, v7x: 64 MiB).
    try:
        vmem_cap = int(pltpu.get_tpu_info().vmem_capacity_bytes)
    except Exception:  # conservative (v7x-safe) fallback
        vmem_cap = 64 * 1024 * 1024
    budget = int(0.75 * vmem_cap)

    io_tile_bytes = 2 * blk * (n_in_p * c_isz + n_out_p * o_isz)   # dbl-buffered x/out
    weight_bytes = (n_in_p * n_hid_p + n_hid_p * n_out_p) * c_isz  # single-buffered
    small_bytes = 16 * max(n_hid_p, n_out_p) * 4                   # b1 + packed LN params

    # Single-shot path (weights resident across the batch grid) vs. hidden-split
    # path (weights streamed per hidden tile into an f32 accumulator) -- the
    # latter is needed for very large n_hidden on v7x's 64 MiB VMEM.
    if hidden_block is not None:
        tile_h = _round_up(min(hidden_block, n_hid_p), LANE)
    elif weight_bytes + io_tile_bytes + small_bytes <= budget:
        tile_h = None
    else:
        cand = n_hid_p
        while True:
            per = (io_tile_bytes + 2 * (n_in_p + n_out_p) * cand * c_isz
                   + small_bytes + blk * n_out_p * 4)
            if per <= budget or cand <= LANE:
                tile_h = cand
                break
            cand = max(LANE, _round_up(cand // 2, LANE))
    if tile_h is not None:
        n_hid_p = _round_up(n_hid_p, tile_h)
        weight_bytes = (n_in_p * n_hid_p + n_hid_p * n_out_p) * c_isz

    # Operand prep.  Fast path: no pad/cast copy when already aligned.
    # NOTE: zero padding is load-bearing for the maskless LayerNorm; if this is
    # ever replaced (e.g. CompilerParams.allow_input_fusion), keep padded
    # weight columns / param lanes exactly zero.
    def _prep(a, shape, dt):
        if a.shape == shape:
            return a if a.dtype == dt else a.astype(dt)
        out = jnp.zeros(shape, dt)
        return out.at[:a.shape[0], :a.shape[1]].set(a.astype(dt))

    xp = _prep(x, (B_p, n_in_p), cdt)
    w1p = _prep(w1, (n_in_p, n_hid_p), cdt)
    w2p = _prep(w2, (n_hid_p, n_out_p), cdt)
    b1p = _prep(b1.reshape(1, n_hid), (1, n_hid_p), jnp.float32)
    lnp = jnp.zeros((8, n_out_p), jnp.float32)
    lnp = lnp.at[0, :n_out].set(b2.reshape(-1).astype(jnp.float32))      # b2
    lnp = lnp.at[1, :n_out].set(gamma.reshape(-1).astype(jnp.float32))   # gamma
    lnp = lnp.at[2, :n_out].set(beta.reshape(-1).astype(jnp.float32))    # beta

    def _const_spec(shape):
        idx = lambda *_: (0,) * len(shape)
        if use_buffered:
            try:
                # Constant index_map -> single buffer (halves resident VMEM).
                return pl.BlockSpec(shape, idx, pipeline_mode=pl.Buffered(1))
            except Exception:
                pass
        return pl.BlockSpec(shape, idx)

    inv_n = 1.0 / n_out

    if tile_h is None:
        grid = (B_p // blk,)
        in_specs = [
            pl.BlockSpec((blk, n_in_p), lambda i: (i, 0)),      # x tile
            _const_spec((n_in_p, n_hid_p)),                     # W1 (resident)
            _const_spec((1, n_hid_p)),                          # b1
            _const_spec((n_hid_p, n_out_p)),                    # W2 (resident)
            _const_spec((8, n_out_p)),                          # b2/gamma/beta packed
        ]
        out_specs = pl.BlockSpec((blk, n_out_p), lambda i: (i, 0))
        scratch_shapes = []
        kernel = functools.partial(_rb_kernel, inv_n=inv_n)
        dims = ("parallel",)
        need = io_tile_bytes + weight_bytes + small_bytes
    else:
        grid = (B_p // blk, n_hid_p // tile_h)
        in_specs = [
            pl.BlockSpec((blk, n_in_p), lambda i, h: (i, 0)),      # x (revisited)
            pl.BlockSpec((n_in_p, tile_h), lambda i, h: (0, h)),   # W1 column tile
            pl.BlockSpec((1, tile_h), lambda i, h: (0, h)),        # b1 tile
            pl.BlockSpec((tile_h, n_out_p), lambda i, h: (h, 0)),  # W2 row tile
            _const_spec((8, n_out_p)),                             # b2/gamma/beta packed
        ]
        out_specs = pl.BlockSpec((blk, n_out_p), lambda i, h: (i, 0))
        scratch_shapes = [pltpu.VMEM((blk, n_out_p), jnp.float32)]
        kernel = functools.partial(_rb_kernel_hsplit, inv_n=inv_n)
        dims = ("parallel", "arbitrary")
        need = (io_tile_bytes + 2 * (n_in_p + n_out_p) * tile_h * c_isz
                + small_bytes + blk * n_out_p * 4)

    vmem_limit = int(min(max(2 * need + (1 << 20), 32 * 1024 * 1024),
                         int(0.9 * vmem_cap)))

    flops = 2 * B_p * n_hid_p * (n_in_p + n_out_p) + 10 * B_p * n_out_p
    cost = pl.CostEstimate(
        flops=int(flops),
        transcendentals=int(B_p),
        bytes_accessed=int(B_p * n_in_p * c_isz + B_p * n_out_p * o_isz
                           + weight_bytes + small_bytes),
    )

    out_p = pl.pallas_call(
        kernel,
        out_shape=jax.ShapeDtypeStruct((B_p, n_out_p), odt),
        grid_spec=pltpu.PrefetchScalarGridSpec(
            num_scalar_prefetch=0,
            grid=grid,
            in_specs=in_specs,
            out_specs=out_specs,
            scratch_shapes=scratch_shapes,
        ),
        compiler_params=pltpu.CompilerParams(
            dimension_semantics=dims,
            vmem_limit_bytes=vmem_limit,
        ),
        cost_estimate=cost,
    )(xp, w1p, b1p, w2p, lnp)

    if B_p == B and n_out_p == n_out:
        return out_p
    return out_p[:B, :n_out]


_USE_BUFFERED = [True]


def recurrent_block(x, w1, b1, w2, b2, gamma, beta, *, block_b=512,
                    use_bf16=True, hidden_block=None, out_dtype=None):
    kw = dict(block_b=block_b, use_bf16=use_bf16, hidden_block=hidden_block,
              out_dtype=out_dtype)
    try:
        return _recurrent_block_impl(x, w1, b1, w2, b2, gamma, beta,
                                     use_buffered=_USE_BUFFERED[0], **kw)
    except Exception:
        if not _USE_BUFFERED[0]:
            raise
        # pl.Buffered(1) not supported by this JAX/Mosaic build: re-trace with
        # default (double) buffering for the resident operands.
        _USE_BUFFERED[0] = False
        return _recurrent_block_impl(x, w1, b1, w2, b2, gamma, beta,
                                     use_buffered=False, **kw)


def reference(x, w1, b1, w2, b2, gamma, beta):
    h = x @ w1 + b1
    h = jnp.where(h > 0, h, LEAKY_SLOPE * h)
    y = h @ w2 + b2
    mean = jnp.mean(y, axis=-1, keepdims=True)
    var = jnp.mean((y - mean) ** 2, axis=-1, keepdims=True)
    return (y - mean) / jnp.sqrt(var + LN_EPS) * gamma + beta


if __name__ == "__main__":
    root = jax.random.PRNGKey(0)
    k_case1, k_case2 = jax.random.split(root)

    def make_inputs(key, B, n_input, n_hidden, n_output):
        ks = jax.random.split(key, 7)
        x = jax.random.normal(ks[0], (B, n_input), dtype=jnp.float32)
        # torch Linear stores W as [out, in]; kept pre-transposed as [in, out].
        w1 = jax.random.normal(ks[1], (n_input, n_hidden), dtype=jnp.float32) * 0.1
        b1 = jax.random.normal(ks[2], (1, n_hidden), dtype=jnp.float32) * 0.1
        w2 = jax.random.normal(ks[3], (n_hidden, n_output), dtype=jnp.float32) * 0.1
        b2 = jax.random.normal(ks[4], (1, n_output), dtype=jnp.float32) * 0.1
        gamma = 1.0 + 0.1 * jax.random.normal(ks[5], (1, n_output), dtype=jnp.float32)
        beta = 0.1 * jax.random.normal(ks[6], (1, n_output), dtype=jnp.float32)
        return x, w1, b1, w2, b2, gamma, beta

    # Case 1: module-sized shapes (batch=16, n_input=16, n_hidden=n_output=32).
    args1 = make_inputs(k_case1, 16, 16, 32, 32)
    ref1 = reference(*args1)

    out_f32 = jax.block_until_ready(recurrent_block(*args1, use_bf16=False))
    assert out_f32.shape == ref1.shape and out_f32.dtype == jnp.float32
    assert jnp.allclose(out_f32, ref1, atol=1e-4, rtol=1e-4), "f32 path mismatch"

    out_bf16 = jax.block_until_ready(
        recurrent_block(*args1, use_bf16=True, out_dtype=jnp.bfloat16))
    assert out_bf16.dtype == jnp.bfloat16
    assert jnp.allclose(out_bf16.astype(jnp.float32), ref1,
                        atol=5e-2, rtol=5e-2), "bf16 path mismatch"

    # Case 2: force the hidden-split (accumulator) path and >=2 batch grid steps.
    args2 = make_inputs(k_case2, 64, 64, 256, 256)
    ref2 = reference(*args2)
    out_split = jax.block_until_ready(
        recurrent_block(*args2, use_bf16=False, hidden_block=128))
    assert out_split.shape == ref2.shape
    assert jnp.allclose(out_split, ref2, atol=1e-4, rtol=1e-4), \
        "hidden-split path mismatch"

    print("KERNEL_OK")
</pallas_src>

<mosaic_0001>
module attributes {stable_mosaic.version = 11 : i64} {
  func.func @_rb_kernel(%arg0: i32, %arg1: memref<16x128xf32, #tpu.memory_space<vmem>>, %arg2: memref<128x128xf32, #tpu.memory_space<vmem>>, %arg3: memref<1x128xf32, #tpu.memory_space<vmem>>, %arg4: memref<128x128xf32, #tpu.memory_space<vmem>>, %arg5: memref<8x128xf32, #tpu.memory_space<vmem>>, %arg6: memref<16x128xf32, #tpu.memory_space<vmem>>) attributes {dimension_semantics = [#tpu.dimension_semantics<parallel>], iteration_bounds = array<i64: 1>, scalar_prefetch = 0 : i64, scratch_operands = 0 : i64, tpu.core_type = #tpu.core_type<tc>, window_params = [{transform_indices = @transform_0, window_bounds = array<i64: 16, 128>}, {pipeline_mode = #tpu.pipeline_mode<synchronous>, transform_indices = @transform_1, window_bounds = array<i64: 128, 128>}, {pipeline_mode = #tpu.pipeline_mode<synchronous>, transform_indices = @transform_2, window_bounds = array<i64: 1, 128>}, {pipeline_mode = #tpu.pipeline_mode<synchronous>, transform_indices = @transform_3, window_bounds = array<i64: 128, 128>}, {pipeline_mode = #tpu.pipeline_mode<synchronous>, transform_indices = @transform_4, window_bounds = array<i64: 8, 128>}, {transform_indices = @transform_5, window_bounds = array<i64: 16, 128>}]} {
    %c0 = arith.constant 0 : index
    %c0_0 = arith.constant 0 : index
    %0 = vector.load %arg1[%c0, %c0_0] : memref<16x128xf32, #tpu.memory_space<vmem>>, vector<16x128xf32>
    %c0_1 = arith.constant 0 : index
    %c0_2 = arith.constant 0 : index
    %1 = vector.load %arg2[%c0_1, %c0_2] : memref<128x128xf32, #tpu.memory_space<vmem>>, vector<128x128xf32>
    %cst = arith.constant dense<0.000000e+00> : vector<16x128xf32>
    %2 = tpu.matmul %0, %1, %cst {dimension_numbers = #tpu.dot_dimension_numbers<[1], [0], [0], [1], [0, 0, 1, 1], [], []>} : vector<16x128xf32>, vector<128x128xf32>, vector<16x128xf32> -> vector<16x128xf32>
    %c0_3 = arith.constant 0 : index
    %c0_4 = arith.constant 0 : index
    %3 = vector.load %arg3[%c0_3, %c0_4] : memref<1x128xf32, #tpu.memory_space<vmem>>, vector<1x128xf32>
    %4 = vector.broadcast %3 : vector<1x128xf32> to vector<16x128xf32>
    %5 = arith.addf %2, %4 : vector<16x128xf32>
    %cst_5 = arith.constant 0.00999999977 : f32
    %6 = vector.broadcast %cst_5 : f32 to vector<16x128xf32>
    %7 = arith.mulf %6, %5 : vector<16x128xf32>
    %8 = arith.maximumf %5, %7 : vector<16x128xf32>
    %c0_6 = arith.constant 0 : index
    %c0_7 = arith.constant 0 : index
    %9 = vector.load %arg4[%c0_6, %c0_7] : memref<128x128xf32, #tpu.memory_space<vmem>>, vector<128x128xf32>
    %cst_8 = arith.constant dense<0.000000e+00> : vector<16x128xf32>
    %10 = tpu.matmul %8, %9, %cst_8 {dimension_numbers = #tpu.dot_dimension_numbers<[1], [0], [0], [1], [0, 0, 1, 1], [], []>} : vector<16x128xf32>, vector<128x128xf32>, vector<16x128xf32> -> vector<16x128xf32>
    %c0_9 = arith.constant 0 : index
    %c0_10 = arith.constant 0 : index
    %11 = vector.load %arg5[%c0_9, %c0_10] : memref<8x128xf32, #tpu.memory_space<vmem>>, vector<1x128xf32>
    %c1 = arith.constant 1 : index
    %c0_11 = arith.constant 0 : index
    %12 = vector.load %arg5[%c1, %c0_11] : memref<8x128xf32, #tpu.memory_space<vmem>>, vector<1x128xf32>
    %c2 = arith.constant 2 : index
    %c0_12 = arith.constant 0 : index
    %13 = vector.load %arg5[%c2, %c0_12] : memref<8x128xf32, #tpu.memory_space<vmem>>, vector<1x128xf32>
    %14 = vector.broadcast %11 : vector<1x128xf32> to vector<16x128xf32>
    %15 = arith.addf %10, %14 : vector<16x128xf32>
    %cst_13 = arith.constant dense<0.000000e+00> : vector<16xf32>
    %16 = vector.multi_reduction <add>, %15, %cst_13 [1] : vector<16x128xf32> to vector<16xf32>
    %17 = vector.shape_cast %16 : vector<16xf32> to vector<16x1xf32>
    %18 = arith.mulf %15, %15 : vector<16x128xf32>
    %cst_14 = arith.constant dense<0.000000e+00> : vector<16xf32>
    %19 = vector.multi_reduction <add>, %18, %cst_14 [1] : vector<16x128xf32> to vector<16xf32>
    %20 = vector.shape_cast %19 : vector<16xf32> to vector<16x1xf32>
    %cst_15 = arith.constant 3.125000e-02 : f32
    %21 = vector.broadcast %cst_15 : f32 to vector<16x1xf32>
    %22 = arith.mulf %17, %21 : vector<16x1xf32>
    %cst_16 = arith.constant 3.125000e-02 : f32
    %23 = vector.broadcast %cst_16 : f32 to vector<16x1xf32>
    %24 = arith.mulf %20, %23 : vector<16x1xf32>
    %25 = arith.mulf %22, %22 : vector<16x1xf32>
    %26 = arith.subf %24, %25 : vector<16x1xf32>
    %cst_17 = arith.constant 9.99999974E-6 : f32
    %27 = vector.broadcast %cst_17 : f32 to vector<16x1xf32>
    %28 = arith.addf %26, %27 : vector<16x1xf32>
    %29 = math.rsqrt %28 : vector<16x1xf32>
    %30 = vector.broadcast %22 : vector<16x1xf32> to vector<16x128xf32>
    %31 = arith.subf %15, %30 : vector<16x128xf32>
    %32 = vector.broadcast %29 : vector<16x1xf32> to vector<16x128xf32>
    %33 = arith.mulf %31, %32 : vector<16x128xf32>
    %34 = vector.broadcast %12 : vector<1x128xf32> to vector<16x128xf32>
    %35 = arith.mulf %33, %34 : vector<16x128xf32>
    %36 = vector.broadcast %13 : vector<1x128xf32> to vector<16x128xf32>
    %37 = arith.addf %35, %36 : vector<16x128xf32>
    %c0_18 = arith.constant 0 : index
    %c0_19 = arith.constant 0 : index
    %38 = vector.load %arg6[%c0_18, %c0_19] : memref<16x128xf32, #tpu.memory_space<vmem>>, vector<16x128xf32>
    tpu.vector_store %arg6[%c0_18, %c0_19], %37 {strides = array<i32>} : memref<16x128xf32, #tpu.memory_space<vmem>>, vector<16x128xf32>,
    return
  }
  func.func @transform_0(%arg0: i32) -> (i32, i32) {
    %c0_i32 = arith.constant 0 : i32
    %c0_i32_0 = arith.constant 0 : i32
    return %arg0, %c0_i32 : i32, i32
  }
  func.func @transform_1(%arg0: i32) -> (i32, i32) {
    %c0_i32 = arith.constant 0 : i32
    %c0_i32_0 = arith.constant 0 : i32
    %c0_i32_1 = arith.constant 0 : i32
    return %c0_i32, %c0_i32_0 : i32, i32
  }
  func.func @transform_2(%arg0: i32) -> (i32, i32) {
    %c0_i32 = arith.constant 0 : i32
    %c0_i32_0 = arith.constant 0 : i32
    %c0_i32_1 = arith.constant 0 : i32
    return %c0_i32, %c0_i32_0 : i32, i32
  }
  func.func @transform_3(%arg0: i32) -> (i32, i32) {
    %c0_i32 = arith.constant 0 : i32
    %c0_i32_0 = arith.constant 0 : i32
    %c0_i32_1 = arith.constant 0 : i32
    return %c0_i32, %c0_i32_0 : i32, i32
  }
  func.func @transform_4(%arg0: i32) -> (i32, i32) {
    %c0_i32 = arith.constant 0 : i32
    %c0_i32_0 = arith.constant 0 : i32
    %c0_i32_1 = arith.constant 0 : i32
    return %c0_i32, %c0_i32_0 : i32, i32
  }
  func.func @transform_5(%arg0: i32) -> (i32, i32) {
    %c0_i32 = arith.constant 0 : i32
    %c0_i32_0 = arith.constant 0 : i32
    return %arg0, %c0_i32 : i32, i32
  }
}

module attributes {stable_mosaic.version = 11 : i64} {
  func.func @_rb_kernel(%arg0: i32, %arg1: memref<16x128xf32, #tpu.memory_space<vmem>>, %arg2: memref<128x128xf32, #tpu.memory_space<vmem>>, %arg3: memref<1x128xf32, #tpu.memory_space<vmem>>, %arg4: memref<128x128xf32, #tpu.memory_space<vmem>>, %arg5: memref<8x128xf32, #tpu.memory_space<vmem>>, %arg6: memref<16x128xf32, #tpu.memory_space<vmem>>) attributes {dimension_semantics = [#tpu.dimension_semantics<parallel>], iteration_bounds = array<i64: 1>, scalar_prefetch = 0 : i64, scratch_operands = 0 : i64, tpu.core_type = #tpu.core_type<tc>, window_params = [{transform_indices = @transform_0, window_bounds = array<i64: 16, 128>}, {pipeline_mode = #tpu.pipeline_mode<synchronous>, transform_indices = @transform_1, window_bounds = array<i64: 128, 128>}, {pipeline_mode = #tpu.pipeline_mode<synchronous>, transform_indices = @transform_2, window_bounds = array<i64: 1, 128>}, {pipeline_mode = #tpu.pipeline_mode<synchronous>, transform_indices = @transform_3, window_bounds = array<i64: 128, 128>}, {pipeline_mode = #tpu.pipeline_mode<synchronous>, transform_indices = @transform_4, window_bounds = array<i64: 8, 128>}, {transform_indices = @transform_5, window_bounds = array<i64: 16, 128>}]} {
    %c0 = arith.constant 0 : index
    %c0_0 = arith.constant 0 : index
    %0 = vector.load %arg1[%c0, %c0_0] : memref<16x128xf32, #tpu.memory_space<vmem>>, vector<16x128xf32>
    %c0_1 = arith.constant 0 : index
    %c0_2 = arith.constant 0 : index
    %1 = vector.load %arg2[%c0_1, %c0_2] : memref<128x128xf32, #tpu.memory_space<vmem>>, vector<128x128xf32>
    %cst = arith.constant dense<0.000000e+00> : vector<16x128xf32>
    %2 = tpu.matmul %0, %1, %cst {dimension_numbers = #tpu.dot_dimension_numbers<[1], [0], [0], [1], [0, 0, 1, 1], [], []>} : vector<16x128xf32>, vector<128x128xf32>, vector<16x128xf32> -> vector<16x128xf32>
    %c0_3 = arith.constant 0 : index
    %c0_4 = arith.constant 0 : index
    %3 = vector.load %arg3[%c0_3, %c0_4] : memref<1x128xf32, #tpu.memory_space<vmem>>, vector<1x128xf32>
    %4 = vector.broadcast %3 : vector<1x128xf32> to vector<16x128xf32>
    %5 = arith.addf %2, %4 : vector<16x128xf32>
    %cst_5 = arith.constant 0.00999999977 : f32
    %6 = vector.broadcast %cst_5 : f32 to vector<16x128xf32>
    %7 = arith.mulf %6, %5 : vector<16x128xf32>
    %8 = arith.maximumf %5, %7 : vector<16x128xf32>
    %c0_6 = arith.constant 0 : index
    %c0_7 = arith.constant 0 : index
    %9 = vector.load %arg4[%c0_6, %c0_7] : memref<128x128xf32, #tpu.memory_space<vmem>>, vector<128x128xf32>
    %cst_8 = arith.constant dense<0.000000e+00> : vector<16x128xf32>
    %10 = tpu.matmul %8, %9, %cst_8 {dimension_numbers = #tpu.dot_dimension_numbers<[1], [0], [0], [1], [0, 0, 1, 1], [], []>} : vector<16x128xf32>, vector<128x128xf32>, vector<16x128xf32> -> vector<16x128xf32>
    %c0_9 = arith.constant 0 : index
    %c0_10 = arith.constant 0 : index
    %11 = vector.load %arg5[%c0_9, %c0_10] : memref<8x128xf32, #tpu.memory_space<vmem>>, vector<1x128xf32>
    %c1 = arith.constant 1 : index
    %c0_11 = arith.constant 0 : index
    %12 = vector.load %arg5[%c1, %c0_11] : memref<8x128xf32, #tpu.memory_space<vmem>>, vector<1x128xf32>
    %c2 = arith.constant 2 : index
    %c0_12 = arith.constant 0 : index
    %13 = vector.load %arg5[%c2, %c0_12] : memref<8x128xf32, #tpu.memory_space<vmem>>, vector<1x128xf32>
    %14 = vector.broadcast %11 : vector<1x128xf32> to vector<16x128xf32>
    %15 = arith.addf %10, %14 : vector<16x128xf32>
    %cst_13 = arith.constant dense<0.000000e+00> : vector<16xf32>
    %16 = vector.multi_reduction <add>, %15, %cst_13 [1] : vector<16x128xf32> to vector<16xf32>
    %17 = vector.shape_cast %16 : vector<16xf32> to vector<16x1xf32>
    %18 = arith.mulf %15, %15 : vector<16x128xf32>
    %cst_14 = arith.constant dense<0.000000e+00> : vector<16xf32>
    %19 = vector.multi_reduction <add>, %18, %cst_14 [1] : vector<16x128xf32> to vector<16xf32>
    %20 = vector.shape_cast %19 : vector<16xf32> to vector<16x1xf32>
    %cst_15 = arith.constant 3.125000e-02 : f32
    %21 = vector.broadcast %cst_15 : f32 to vector<16x1xf32>
    %22 = arith.mulf %17, %21 : vector<16x1xf32>
    %cst_16 = arith.constant 3.125000e-02 : f32
    %23 = vector.broadcast %cst_16 : f32 to vector<16x1xf32>
    %24 = arith.mulf %20, %23 : vector<16x1xf32>
    %25 = arith.mulf %22, %22 : vector<16x1xf32>
    %26 = arith.subf %24, %25 : vector<16x1xf32>
    %cst_17 = arith.constant 9.99999974E-6 : f32
    %27 = vector.broadcast %cst_17 : f32 to vector<16x1xf32>
    %28 = arith.addf %26, %27 : vector<16x1xf32>
    %29 = math.rsqrt %28 : vector<16x1xf32>
    %30 = vector.broadcast %22 : vector<16x1xf32> to vector<16x128xf32>
    %31 = arith.subf %15, %30 : vector<16x128xf32>
    %32 = vector.broadcast %29 : vector<16x1xf32> to vector<16x128xf32>
    %33 = arith.mulf %31, %32 : vector<16x128xf32>
    %34 = vector.broadcast %12 : vector<1x128xf32> to vector<16x128xf32>
    %35 = arith.mulf %33, %34 : vector<16x128xf32>
    %36 = vector.broadcast %13 : vector<1x128xf32> to vector<16x128xf32>
    %37 = arith.addf %35, %36 : vector<16x128xf32>
    %c0_18 = arith.constant 0 : index
    %c0_19 = arith.constant 0 : index
    %38 = vector.load %arg6[%c0_18, %c0_19] : memref<16x128xf32, #tpu.memory_space<vmem>>, vector<16x128xf32>
    tpu.vector_store %arg6[%c0_18, %c0_19], %37 {strides = array<i32>} : memref<16x128xf32, #tpu.memory_space<vmem>>, vector<16x128xf32>,
    return
  }
  func.func @transform_0(%arg0: i32) -> (i32, i32) {
    %c0_i32 = arith.constant 0 : i32
    %c0_i32_0 = arith.constant 0 : i32
    return %arg0, %c0_i32 : i32, i32
  }
  func.func @transform_1(%arg0: i32) -> (i32, i32) {
    %c0_i32 = arith.constant 0 : i32
    %c0_i32_0 = arith.constant 0 : i32
    %c0_i32_1 = arith.constant 0 : i32
    return %c0_i32, %c0_i32_0 : i32, i32
  }
  func.func @transform_2(%arg0: i32) -> (i32, i32) {
    %c0_i32 = arith.constant 0 : i32
    %c0_i32_0 = arith.constant 0 : i32
    %c0_i32_1 = arith.constant 0 : i32
    return %c0_i32, %c0_i32_0 : i32, i32
  }
  func.func @transform_3(%arg0: i32) -> (i32, i32) {
    %c0_i32 = arith.constant 0 : i32
    %c0_i32_0 = arith.constant 0 : i32
    %c0_i32_1 = arith.constant 0 : i32
    return %c0_i32, %c0_i32_0 : i32, i32
  }
  func.func @transform_4(%arg0: i32) -> (i32, i32) {
    %c0_i32 = arith.constant 0 : i32
    %c0_i32_0 = arith.constant 0 : i32
    %c0_i32_1 = arith.constant 0 : i32
    return %c0_i32, %c0_i32_0 : i32, i32
  }
  func.func @transform_5(%arg0: i32) -> (i32, i32) {
    %c0_i32 = arith.constant 0 : i32
    %c0_i32_0 = arith.constant 0 : i32
    return %arg0, %c0_i32 : i32, i32
  }
}

</mosaic_0001>

<llo_original>
// kernel: _recurrent_block_impl.1
$region0: #{_recurrent_block_impl.1}
  #allocation0 [shape = 'u32[]', space=smem, size = 0x4, offset = 0x4, fixed_abs, tag = 'smem constant byte address 0x4 - core index']
  #allocation1 [shape = 'u32[144,128]{1,0:T(1,128)}', space=vmem, size = 0x12000, scoped, tag = 'internal scratch']
  %s0 = inlined_call_operand.vmem [shape: f32[16,128], index: 0, kind: input, shape index: {}]
  %s1 = inlined_call_operand.vmem [shape: f32[128,128], index: 1, kind: input, shape index: {}]
  %s2 = inlined_call_operand.vmem [shape: f32[1,128], index: 2, kind: input, shape index: {}]
  %s3 = inlined_call_operand.vmem [shape: f32[128,128], index: 3, kind: input, shape index: {}]
  %s4 = inlined_call_operand.vmem [shape: f32[8,128], index: 4, kind: input, shape index: {}]
  %s5 = inlined_call_operand.hbm [shape: f32[16,128], index: 5, kind: output, shape index: {}]
  %s6 = sld [smem:[#allocation0]]
  $region30: #{_recurrent_block_impl.1} parent=0
    _
  %s8 = ssub.s32 1, %s6
  %s9 = scalar_select 0, %s8, %s6
  $region1: #{_recurrent_block_impl.1} parent=0
    #allocation2 [shape = 'u8[8192]{0}', space=vmem, size = 0x2000, scoped, tag = 'output window, operand 0, single buffered']
    #allocation3 [shape = 's32[1]{0}', space=sflag, size = 0x4, scoped, tag = 'scoped memory for _recurrent_block_impl.1']
    %10 = vsyncpa [#allocation3], 0
    // Predicated region
    $region2: #{_recurrent_block_impl.1} parent=1 // pred_check
      _
    $region3: #{_recurrent_block_impl.1} parent=1 // pred_check_branch
      %12 = sbr.rel (0) target = $region5
    $region4: #{_recurrent_block_impl.1} parent=1 // pred_region
      _
    $region5: #{_recurrent_block_impl.1} parent=1 // pred_fallthru
      _
    // Predicated region
    $region6: #{_recurrent_block_impl.1} parent=1 // pred_check
      _
    $region7: #{_recurrent_block_impl.1} parent=1 // pred_check_branch
      %14 = sbr.rel (0) target = $region9
    $region8: #{_recurrent_block_impl.1} parent=1 // pred_region
      _
    $region9: #{_recurrent_block_impl.1} parent=1 // pred_fallthru
      _
    // Predicated region
    $region10: #{_recurrent_block_impl.1} parent=1 // pred_check
      _
    $region11: #{_recurrent_block_impl.1} parent=1 // pred_check_branch
      %16 = sbr.rel (0) target = $region13
    $region12: #{_recurrent_block_impl.1} parent=1 // pred_region
      _
    $region13: #{_recurrent_block_impl.1} parent=1 // pred_fallthru
      _
    // Predicated region
    $region14: #{_recurrent_block_impl.1} parent=1 // pred_check
      _
    $region15: #{_recurrent_block_impl.1} parent=1 // pred_check_branch
      %18 = sbr.rel (0) target = $region17
    $region16: #{_recurrent_block_impl.1} parent=1 // pred_region
      _
    $region17: #{_recurrent_block_impl.1} parent=1 // pred_fallthru
      _
    // Predicated region
    $region18: #{_recurrent_block_impl.1} parent=1 // pred_check
      _
    $region19: #{_recurrent_block_impl.1} parent=1 // pred_check_branch
      %20 = sbr.rel (0) target = $region21
    $region20: #{_recurrent_block_impl.1} parent=1 // pred_region
      _
    $region21: #{_recurrent_block_impl.1} parent=1 // pred_fallthru
      _
    %v21 = vld [vmem:[%s0] sm:$0xff]
    %v22 = vld [vmem:[%s0 + $0x8] sm:$0xff]
    %v23 = vld [vmem:[%s1] sm:$0xff]
    %v24 = vld [vmem:[%s1 + $0x8] sm:$0xff]
    %v25 = vld [vmem:[%s1 + $0x10] sm:$0xff]
    %v26 = vld [vmem:[%s1 + $0x18] sm:$0xff]
    %v27 = vld [vmem:[%s1 + $0x20] sm:$0xff]
    %v28 = vld [vmem:[%s1 + $0x28] sm:$0xff]
    %v29 = vld [vmem:[%s1 + $0x30] sm:$0xff]
    %v30 = vld [vmem:[%s1 + $0x38] sm:$0xff]
    %v31 = vld [vmem:[%s1 + $0x40] sm:$0xff]
    %v32 = vld [vmem:[%s1 + $0x48] sm:$0xff]
    %v33 = vld [vmem:[%s1 + $0x50] sm:$0xff]
    %v34 = vld [vmem:[%s1 + $0x58] sm:$0xff]
    %v35 = vld [vmem:[%s1 + $0x60] sm:$0xff]
    %v36 = vld [vmem:[%s1 + $0x68] sm:$0xff]
    %v37 = vld [vmem:[%s1 + $0x70] sm:$0xff]
    %v38 = vld [vmem:[%s1 + $0x78] sm:$0xff]
    %v39 = vld [vmem:[%s2] sm:$0x1]
    %v41 = vlaneseq
    %v42 = vshrl.u32 %v41, 7
    %v43 = vsub.s32 0, %v42
    %v44 = vrot.slane %v39, %v43
    %46 = vmatprep.subr.mxu0 0.0
    %47 = vmatpush1.msra.mxu0 %v38
    %48 = vmatprep.subr.mxu0 0.0
    %49 = vmatpush1.msra.mxu0 %v37
    %50 = vmatprep.subr.mxu0 0.0
    %51 = vmatpush1.msra.mxu0 %v36
    %52 = vmatprep.subr.mxu0 0.0
    %53 = vmatpush1.msra.mxu0 %v35
    %54 = vmatprep.subr.mxu0 0.0
    %55 = vmatpush1.msra.mxu0 %v34
    %56 = vmatprep.subr.mxu0 0.0
    %57 = vmatpush1.msra.mxu0 %v33
    %58 = vmatprep.subr.mxu0 0.0
    %59 = vmatpush1.msra.mxu0 %v32
    %60 = vmatprep.subr.mxu0 0.0
    %61 = vmatpush1.msra.mxu0 %v31
    %62 = vmatprep.subr.mxu0 0.0
    %63 = vmatpush1.msra.mxu0 %v30
    %64 = vmatprep.subr.mxu0 0.0
    %65 = vmatpush1.msra.mxu0 %v29
    %66 = vmatprep.subr.mxu0 0.0
    %67 = vmatpush1.msra.mxu0 %v28
    %68 = vmatprep.subr.mxu0 0.0
    %69 = vmatpush1.msra.mxu0 %v27
    %70 = vmatprep.subr.mxu0 0.0
    %71 = vmatpush1.msra.mxu0 %v26
    %72 = vmatprep.subr.mxu0 0.0
    %73 = vmatpush1.msra.mxu0 %v25
    %74 = vmatprep.subr.mxu0 0.0
    %75 = vmatpush1.msra.mxu0 %v24
    %76 = vmatprep.subr.mxu0 0.0
    %77 = vmatpush1.msra.mxu0 %v23
    %78 = vmatprep.subr.mxu0 0.0
    %79 = vmatpush2.msra.mxu0 0.0
    %80 = vmatprep.subr.mxu0 0.0
    %81 = vmatpush2.msra.mxu0 0.0
    %82 = vmatprep.subr.mxu0 0.0
    %83 = vmatpush2.msra.mxu0 0.0
    %84 = vmatprep.subr.mxu0 0.0
    %85 = vmatpush2.msra.mxu0 0.0
    %86 = vmatprep.subr.mxu0 0.0
    %87 = vmatpush2.msra.mxu0 0.0
    %88 = vmatprep.subr.mxu0 0.0
    %89 = vmatpush2.msra.mxu0 0.0
    %90 = vmatprep.subr.mxu0 0.0
    %91 = vmatpush2.msra.mxu0 0.0
    %92 = vmatprep.subr.mxu0 0.0
    %93 = vmatpush2.msra.mxu0 0.0
    %94 = vmatprep.subr.mxu0 0.0
    %95 = vmatpush2.msra.mxu0 0.0
    %96 = vmatprep.subr.mxu0 0.0
    %97 = vmatpush2.msra.mxu0 0.0
    %98 = vmatprep.subr.mxu0 0.0
    %99 = vmatpush2.msra.mxu0 0.0
    %100 = vmatprep.subr.mxu0 0.0
    %101 = vmatpush2.msra.mxu0 0.0
    %102 = vmatprep.subr.mxu0 0.0
    %103 = vmatpush2.msra.mxu0 0.0
    %104 = vmatprep.subr.mxu0 0.0
    %105 = vmatpush2.msra.mxu0 0.0
    %106 = vmatprep.subr.mxu0 0.0
    %107 = vmatpush2.msra.mxu0 0.0
    %108 = vmatprep.subr.mxu0 0.0
    %109 = vmatpush2.msra.mxu0 0.0
    %110 = vmatprep.mubr.f32.mxu0 0.0
    %111 = vmatmul.mubr.f32.gmra.mxu0 %v21
    %v112 = vpop.f32.mrf.mxu0
    %v113 = vadd.f32 %v44, %v112
    %v114 = vpop.f32.mrf.mxu0
    %115 = vmatprep.mubr.f32.mxu0 0.0
    %116 = vmatmul.mubr.f32.gmra.mxu0 %v22
    %v117 = vpop.f32.mrf.mxu0
    %v118 = vadd.f32 %v44, %v117
    %v119 = vpop.f32.mrf.mxu0
    %120 = vdwg.mxu0
    %v121 = vmul.f32 %v113, 0.01
    %v122 = vmul.f32 %v118, 0.01
    %v123 = vmax.f32 %v113, %v121
    %v124 = vmax.f32 %v118, %v122
    %v125 = vld [vmem:[%s3] sm:$0xff]
    %v126 = vld [vmem:[%s3 + $0x8] sm:$0xff]
    %v127 = vld [vmem:[%s3 + $0x10] sm:$0xff]
    %v128 = vld [vmem:[%s3 + $0x18] sm:$0xff]
    %v129 = vld [vmem:[%s3 + $0x20] sm:$0xff]
    %v130 = vld [vmem:[%s3 + $0x28] sm:$0xff]
    %v131 = vld [vmem:[%s3 + $0x30] sm:$0xff]
    %v132 = vld [vmem:[%s3 + $0x38] sm:$0xff]
    %v133 = vld [vmem:[%s3 + $0x40] sm:$0xff]
    %v134 = vld [vmem:[%s3 + $0x48] sm:$0xff]
    %v135 = vld [vmem:[%s3 + $0x50] sm:$0xff]
    %v136 = vld [vmem:[%s3 + $0x58] sm:$0xff]
    %v137 = vld [vmem:[%s3 + $0x60] sm:$0xff]
    %v138 = vld [vmem:[%s3 + $0x68] sm:$0xff]
    %v139 = vld [vmem:[%s3 + $0x70] sm:$0xff]
    %v140 = vld [vmem:[%s3 + $0x78] sm:$0xff]
    %v141 = vld [vmem:[%s4] sm:$0x1]
    %v142 = vld [vmem:[%s4 + $0x1] sm:$0x1]
    %v143 = vld [vmem:[%s4 + $0x2] sm:$0x1]
    %v144 = vlaneseq
    %v145 = vshrl.u32 %v144, 7
    %v146 = vsub.s32 0, %v145
    %v147 = vrot.slane %v141, %v146
    %148 = vmatprep.subr.mxu0 0.0
    %149 = vmatpush1.msra.mxu0 %v140
    %150 = vmatprep.subr.mxu0 0.0
    %151 = vmatpush1.msra.mxu0 %v139
    %152 = vmatprep.subr.mxu0 0.0
    %153 = vmatpush1.msra.mxu0 %v138
    %154 = vmatprep.subr.mxu0 0.0
    %155 = vmatpush1.msra.mxu0 %v137
    %156 = vmatprep.subr.mxu0 0.0
    %157 = vmatpush1.msra.mxu0 %v136
    %158 = vmatprep.subr.mxu0 0.0
    %159 = vmatpush1.msra.mxu0 %v135
    %160 = vmatprep.subr.mxu0 0.0
    %161 = vmatpush1.msra.mxu0 %v134
    %162 = vmatprep.subr.mxu0 0.0
    %163 = vmatpush1.msra.mxu0 %v133
    %164 = vmatprep.subr.mxu0 0.0
    %165 = vmatpush1.msra.mxu0 %v132
    %166 = vmatprep.subr.mxu0 0.0
    %167 = vmatpush1.msra.mxu0 %v131
    %168 = vmatprep.subr.mxu0 0.0
    %169 = vmatpush1.msra.mxu0 %v130
    %170 = vmatprep.subr.mxu0 0.0
    %171 = vmatpush1.msra.mxu0 %v129
    %172 = vmatprep.subr.mxu0 0.0
    %173 = vmatpush1.msra.mxu0 %v128
    %174 = vmatprep.subr.mxu0 0.0
    %175 = vmatpush1.msra.mxu0 %v127
    %176 = vmatprep.subr.mxu0 0.0
    %177 = vmatpush1.msra.mxu0 %v126
    %178 = vmatprep.subr.mxu0 0.0
    %179 = vmatpush1.msra.mxu0 %v125
    %180 = vmatprep.subr.mxu0 0.0
    %181 = vmatpush2.msra.mxu0 0.0
    %182 = vmatprep.subr.mxu0 0.0
    %183 = vmatpush2.msra.mxu0 0.0
    %184 = vmatprep.subr.mxu0 0.0
    %185 = vmatpush2.msra.mxu0 0.0
    %186 = vmatprep.subr.mxu0 0.0
    %187 = vmatpush2.msra.mxu0 0.0
    %188 = vmatprep.subr.mxu0 0.0
    %189 = vmatpush2.msra.mxu0 0.0
    %190 = vmatprep.subr.mxu0 0.0
    %191 = vmatpush2.msra.mxu0 0.0
    %192 = vmatprep.subr.mxu0 0.0
    %193 = vmatpush2.msra.mxu0 0.0
    %194 = vmatprep.subr.mxu0 0.0
    %195 = vmatpush2.msra.mxu0 0.0
    %196 = vmatprep.subr.mxu0 0.0
    %197 = vmatpush2.msra.mxu0 0.0
    %198 = vmatprep.subr.mxu0 0.0
    %199 = vmatpush2.msra.mxu0 0.0
    %200 = vmatprep.subr.mxu0 0.0
    %201 = vmatpush2.msra.mxu0 0.0
    %202 = vmatprep.subr.mxu0 0.0
    %203 = vmatpush2.msra.mxu0 0.0
    %204 = vmatprep.subr.mxu0 0.0
    %205 = vmatpush2.msra.mxu0 0.0
    %206 = vmatprep.subr.mxu0 0.0
    %207 = vmatpush2.msra.mxu0 0.0
    %208 = vmatprep.subr.mxu0 0.0
    %209 = vmatpush2.msra.mxu0 0.0
    %210 = vmatprep.subr.mxu0 0.0
    %211 = vmatpush2.msra.mxu0 0.0
    %212 = vmatprep.mubr.f32.mxu0 0.0
    %213 = vmatmul.mubr.f32.gmra.mxu0 %v123
    %v214 = vpop.f32.mrf.mxu0
    %v215 = vadd.f32 %v147, %v214
    %v216 = vpop.f32.mrf.mxu0
    %217 = vmatprep.mubr.f32.mxu0 0.0
    %218 = vmatmul.mubr.f32.gmra.mxu0 %v124
    %v219 = vpop.f32.mrf.mxu0
    %v220 = vadd.f32 %v147, %v219
    %v221 = vpop.f32.mrf.mxu0
    %222 = vdwg.mxu0
    %223 = vadd.xlane.f32.xlu0 %v215
    %v224 = vpop.xlane.xlu0 %223
    %225 = vadd.xlane.f32.xlu0 %v220
    %v226 = vpop.xlane.xlu0 %225
    %v227 = vmul.f32 %v215, %v215
    %v228 = vmul.f32 %v220, %v220
    %229 = vadd.xlane.f32.xlu0 %v227
    %v230 = vpop.xlane.xlu0 %229
    %231 = vadd.xlane.f32.xlu0 %v228
    %v232 = vpop.xlane.xlu0 %231
    %v233 = vmul.f32 %v224, 0.03125
    %v234 = vmul.f32 %v226, 0.03125
    %v235 = vmul.f32 %v230, 0.03125
    %v236 = vmul.f32 %v232, 0.03125
    %v237 = vmul.f32 %v233, %v233
    %v238 = vmul.f32 %v234, %v234
    %v239 = vsub.f32 %v235, %v237
    %v240 = vsub.f32 %v236, %v238
    %v241 = vadd.f32 %v239, 1e-05
    %v242 = vadd.f32 %v240, 1e-05
    %v243 = vrsqrt.pop %v241
    %v244 = vrsqrt.pop %v242
    %v245 = vsub.f32 %v215, %v233
    %v246 = vsub.f32 %v220, %v234
    %v247 = vmul.f32 %v245, %v243
    %v248 = vmul.f32 %v246, %v244
    %v249 = vlaneseq
    %v250 = vshrl.u32 %v249, 7
    %v251 = vsub.s32 0, %v250
    %v252 = vrot.slane %v142, %v251
    %v253 = vmul.f32 %v247, %v252
    %v254 = vmul.f32 %v248, %v252
    %v255 = vlaneseq
    %v256 = vshrl.u32 %v255, 7
    %v257 = vsub.s32 0, %v256
    %v258 = vrot.slane %v143, %v257
    %v259 = vadd.f32 %v253, %v258
    %v260 = vadd.f32 %v254, %v258
    %261 = vst [vmem:[#allocation2] sm:$0xff] %v259
    %262 = vst [vmem:[#allocation2 + $0x8] sm:$0xff] %v260
    // Predicated region
    $region22: #{_recurrent_block_impl.1} parent=1 // pred_check
      _
    $region23: #{_recurrent_block_impl.1} parent=1 // pred_check_branch
      %264 = sbr.rel (0) target = $region25
    $region24: #{_recurrent_block_impl.1} parent=1 // pred_region
      %s266 = ssub.s32 256, 256
      %267 = vsyncadd [#allocation3], %s266
      %s268 = sshll.u32 [#allocation2], 4
      %s269 = int_to_ptr.vmem [resolvable:$true] %s268
      %274 = dma.vmem_to_hbm [thread:$0]  %s269, 256, %s5, [#allocation3], 128, 128, 8
    $region25: #{_recurrent_block_impl.1} parent=1 // pred_fallthru
      _
    // Predicated region
    $region26: #{_recurrent_block_impl.1} parent=1 // pred_check
      _
    $region27: #{_recurrent_block_impl.1} parent=1 // pred_check_branch
      %276 = sbr.rel (0) target = $region29
    $region28: #{_recurrent_block_impl.1} parent=1 // pred_region
      %277 = dma.done [#allocation3], 256
    $region29: #{_recurrent_block_impl.1} parent=1 // pred_fallthru
      _
    %278 = vsyncpa [#allocation3], 1

// kernel: _recurrent_block_impl.1
$region0: #{_recurrent_block_impl.1}
  #allocation0 [shape = 'u32[]', space=smem, size = 0x4, offset = 0x4, fixed_abs, tag = 'smem constant byte address 0x4 - core index']
  #allocation1 [shape = 'u32[144,128]{1,0:T(1,128)}', space=vmem, size = 0x12000, scoped, tag = 'internal scratch']
  %s0 = inlined_call_operand.vmem [shape: f32[16,128], index: 0, kind: input, shape index: {}]
  %s1 = inlined_call_operand.vmem [shape: f32[128,128], index: 1, kind: input, shape index: {}]
  %s2 = inlined_call_operand.vmem [shape: f32[1,128], index: 2, kind: input, shape index: {}]
  %s3 = inlined_call_operand.vmem [shape: f32[128,128], index: 3, kind: input, shape index: {}]
  %s4 = inlined_call_operand.vmem [shape: f32[8,128], index: 4, kind: input, shape index: {}]
  %s5 = inlined_call_operand.hbm [shape: f32[16,128], index: 5, kind: output, shape index: {}]
  %s6 = sld [smem:[#allocation0]]
  $region30: #{_recurrent_block_impl.1} parent=0
    _
  %s8 = ssub.s32 1, %s6
  %s9 = scalar_select 0, %s8, %s6
  $region1: #{_recurrent_block_impl.1} parent=0
    #allocation2 [shape = 'u8[8192]{0}', space=vmem, size = 0x2000, scoped, tag = 'output window, operand 0, single buffered']
    #allocation3 [shape = 's32[1]{0}', space=sflag, size = 0x4, scoped, tag = 'scoped memory for _recurrent_block_impl.1']
    %10 = vsyncpa [#allocation3], 0
    // Predicated region
    $region2: #{_recurrent_block_impl.1} parent=1 // pred_check
      _
    $region3: #{_recurrent_block_impl.1} parent=1 // pred_check_branch
      %12 = sbr.rel (0) target = $region5
    $region4: #{_recurrent_block_impl.1} parent=1 // pred_region
      _
    $region5: #{_recurrent_block_impl.1} parent=1 // pred_fallthru
      _
    // Predicated region
    $region6: #{_recurrent_block_impl.1} parent=1 // pred_check
      _
    $region7: #{_recurrent_block_impl.1} parent=1 // pred_check_branch
      %14 = sbr.rel (0) target = $region9
    $region8: #{_recurrent_block_impl.1} parent=1 // pred_region
      _
    $region9: #{_recurrent_block_impl.1} parent=1 // pred_fallthru
      _
    // Predicated region
    $region10: #{_recurrent_block_impl.1} parent=1 // pred_check
      _
    $region11: #{_recurrent_block_impl.1} parent=1 // pred_check_branch
      %16 = sbr.rel (0) target = $region13
    $region12: #{_recurrent_block_impl.1} parent=1 // pred_region
      _
    $region13: #{_recurrent_block_impl.1} parent=1 // pred_fallthru
      _
    // Predicated region
    $region14: #{_recurrent_block_impl.1} parent=1 // pred_check
      _
    $region15: #{_recurrent_block_impl.1} parent=1 // pred_check_branch
      %18 = sbr.rel (0) target = $region17
    $region16: #{_recurrent_block_impl.1} parent=1 // pred_region
      _
    $region17: #{_recurrent_block_impl.1} parent=1 // pred_fallthru
      _
    // Predicated region
    $region18: #{_recurrent_block_impl.1} parent=1 // pred_check
      _
    $region19: #{_recurrent_block_impl.1} parent=1 // pred_check_branch
      %20 = sbr.rel (0) target = $region21
    $region20: #{_recurrent_block_impl.1} parent=1 // pred_region
      _
    $region21: #{_recurrent_block_impl.1} parent=1 // pred_fallthru
      _
    %v21 = vld [vmem:[%s0] sm:$0xff]
    %v22 = vld [vmem:[%s0 + $0x8] sm:$0xff]
    %v23 = vld [vmem:[%s1] sm:$0xff]
    %v24 = vld [vmem:[%s1 + $0x8] sm:$0xff]
    %v25 = vld [vmem:[%s1 + $0x10] sm:$0xff]
    %v26 = vld [vmem:[%s1 + $0x18] sm:$0xff]
    %v27 = vld [vmem:[%s1 + $0x20] sm:$0xff]
    %v28 = vld [vmem:[%s1 + $0x28] sm:$0xff]
    %v29 = vld [vmem:[%s1 + $0x30] sm:$0xff]
    %v30 = vld [vmem:[%s1 + $0x38] sm:$0xff]
    %v31 = vld [vmem:[%s1 + $0x40] sm:$0xff]
    %v32 = vld [vmem:[%s1 + $0x48] sm:$0xff]
    %v33 = vld [vmem:[%s1 + $0x50] sm:$0xff]
    %v34 = vld [vmem:[%s1 + $0x58] sm:$0xff]
    %v35 = vld [vmem:[%s1 + $0x60] sm:$0xff]
    %v36 = vld [vmem:[%s1 + $0x68] sm:$0xff]
    %v37 = vld [vmem:[%s1 + $0x70] sm:$0xff]
    %v38 = vld [vmem:[%s1 + $0x78] sm:$0xff]
    %v39 = vld [vmem:[%s2] sm:$0x1]
    %v41 = vlaneseq
    %v42 = vshrl.u32 %v41, 7
    %v43 = vsub.s32 0, %v42
    %v44 = vrot.slane %v39, %v43
    %46 = vmatprep.subr.mxu0 0.0
    %47 = vmatpush1.msra.mxu0 %v38
    %48 = vmatprep.subr.mxu0 0.0
    %49 = vmatpush1.msra.mxu0 %v37
    %50 = vmatprep.subr.mxu0 0.0
    %51 = vmatpush1.msra.mxu0 %v36
    %52 = vmatprep.subr.mxu0 0.0
    %53 = vmatpush1.msra.mxu0 %v35
    %54 = vmatprep.subr.mxu0 0.0
    %55 = vmatpush1.msra.mxu0 %v34
    %56 = vmatprep.subr.mxu0 0.0
    %57 = vmatpush1.msra.mxu0 %v33
    %58 = vmatprep.subr.mxu0 0.0
    %59 = vmatpush1.msra.mxu0 %v32
    %60 = vmatprep.subr.mxu0 0.0
    %61 = vmatpush1.msra.mxu0 %v31
    %62 = vmatprep.subr.mxu0 0.0
    %63 = vmatpush1.msra.mxu0 %v30
    %64 = vmatprep.subr.mxu0 0.0
    %65 = vmatpush1.msra.mxu0 %v29
    %66 = vmatprep.subr.mxu0 0.0
    %67 = vmatpush1.msra.mxu0 %v28
    %68 = vmatprep.subr.mxu0 0.0
    %69 = vmatpush1.msra.mxu0 %v27
    %70 = vmatprep.subr.mxu0 0.0
    %71 = vmatpush1.msra.mxu0 %v26
    %72 = vmatprep.subr.mxu0 0.0
    %73 = vmatpush1.msra.mxu0 %v25
    %74 = vmatprep.subr.mxu0 0.0
    %75 = vmatpush1.msra.mxu0 %v24
    %76 = vmatprep.subr.mxu0 0.0
    %77 = vmatpush1.msra.mxu0 %v23
    %78 = vmatprep.subr.mxu0 0.0
    %79 = vmatpush2.msra.mxu0 0.0
    %80 = vmatprep.subr.mxu0 0.0
    %81 = vmatpush2.msra.mxu0 0.0
    %82 = vmatprep.subr.mxu0 0.0
    %83 = vmatpush2.msra.mxu0 0.0
    %84 = vmatprep.subr.mxu0 0.0
    %85 = vmatpush2.msra.mxu0 0.0
    %86 = vmatprep.subr.mxu0 0.0
    %87 = vmatpush2.msra.mxu0 0.0
    %88 = vmatprep.subr.mxu0 0.0
    %89 = vmatpush2.msra.mxu0 0.0
    %90 = vmatprep.subr.mxu0 0.0
    %91 = vmatpush2.msra.mxu0 0.0
    %92 = vmatprep.subr.mxu0 0.0
    %93 = vmatpush2.msra.mxu0 0.0
    %94 = vmatprep.subr.mxu0 0.0
    %95 = vmatpush2.msra.mxu0 0.0
    %96 = vmatprep.subr.mxu0 0.0
    %97 = vmatpush2.msra.mxu0 0.0
    %98 = vmatprep.subr.mxu0 0.0
    %99 = vmatpush2.msra.mxu0 0.0
    %100 = vmatprep.subr.mxu0 0.0
    %101 = vmatpush2.msra.mxu0 0.0
    %102 = vmatprep.subr.mxu0 0.0
    %103 = vmatpush2.msra.mxu0 0.0
    %104 = vmatprep.subr.mxu0 0.0
    %105 = vmatpush2.msra.mxu0 0.0
    %106 = vmatprep.subr.mxu0 0.0
    %107 = vmatpush2.msra.mxu0 0.0
    %108 = vmatprep.subr.mxu0 0.0
    %109 = vmatpush2.msra.mxu0 0.0
    %110 = vmatprep.mubr.f32.mxu0 0.0
    %111 = vmatmul.mubr.f32.gmra.mxu0 %v21
    %v112 = vpop.f32.mrf.mxu0
    %v113 = vadd.f32 %v44, %v112
    %v114 = vpop.f32.mrf.mxu0
    %115 = vmatprep.mubr.f32.mxu0 0.0
    %116 = vmatmul.mubr.f32.gmra.mxu0 %v22
    %v117 = vpop.f32.mrf.mxu0
    %v118 = vadd.f32 %v44, %v117
    %v119 = vpop.f32.mrf.mxu0
    %120 = vdwg.mxu0
    %v121 = vmul.f32 %v113, 0.01
    %v122 = vmul.f32 %v118, 0.01
    %v123 = vmax.f32 %v113, %v121
    %v124 = vmax.f32 %v118, %v122
    %v125 = vld [vmem:[%s3] sm:$0xff]
    %v126 = vld [vmem:[%s3 + $0x8] sm:$0xff]
    %v127 = vld [vmem:[%s3 + $0x10] sm:$0xff]
    %v128 = vld [vmem:[%s3 + $0x18] sm:$0xff]
    %v129 = vld [vmem:[%s3 + $0x20] sm:$0xff]
    %v130 = vld [vmem:[%s3 + $0x28] sm:$0xff]
    %v131 = vld [vmem:[%s3 + $0x30] sm:$0xff]
    %v132 = vld [vmem:[%s3 + $0x38] sm:$0xff]
    %v133 = vld [vmem:[%s3 + $0x40] sm:$0xff]
    %v134 = vld [vmem:[%s3 + $0x48] sm:$0xff]
    %v135 = vld [vmem:[%s3 + $0x50] sm:$0xff]
    %v136 = vld [vmem:[%s3 + $0x58] sm:$0xff]
    %v137 = vld [vmem:[%s3 + $0x60] sm:$0xff]
    %v138 = vld [vmem:[%s3 + $0x68] sm:$0xff]
    %v139 = vld [vmem:[%s3 + $0x70] sm:$0xff]
    %v140 = vld [vmem:[%s3 + $0x78] sm:$0xff]
    %v141 = vld [vmem:[%s4] sm:$0x1]
    %v142 = vld [vmem:[%s4 + $0x1] sm:$0x1]
    %v143 = vld [vmem:[%s4 + $0x2] sm:$0x1]
    %v144 = vlaneseq
    %v145 = vshrl.u32 %v144, 7
    %v146 = vsub.s32 0, %v145
    %v147 = vrot.slane %v141, %v146
    %148 = vmatprep.subr.mxu0 0.0
    %149 = vmatpush1.msra.mxu0 %v140
    %150 = vmatprep.subr.mxu0 0.0
    %151 = vmatpush1.msra.mxu0 %v139
    %152 = vmatprep.subr.mxu0 0.0
    %153 = vmatpush1.msra.mxu0 %v138
    %154 = vmatprep.subr.mxu0 0.0
    %155 = vmatpush1.msra.mxu0 %v137
    %156 = vmatprep.subr.mxu0 0.0
    %157 = vmatpush1.msra.mxu0 %v136
    %158 = vmatprep.subr.mxu0 0.0
    %159 = vmatpush1.msra.mxu0 %v135
    %160 = vmatprep.subr.mxu0 0.0
    %161 = vmatpush1.msra.mxu0 %v134
    %162 = vmatprep.subr.mxu0 0.0
    %163 = vmatpush1.msra.mxu0 %v133
    %164 = vmatprep.subr.mxu0 0.0
    %165 = vmatpush1.msra.mxu0 %v132
    %166 = vmatprep.subr.mxu0 0.0
    %167 = vmatpush1.msra.mxu0 %v131
    %168 = vmatprep.subr.mxu0 0.0
    %169 = vmatpush1.msra.mxu0 %v130
    %170 = vmatprep.subr.mxu0 0.0
    %171 = vmatpush1.msra.mxu0 %v129
    %172 = vmatprep.subr.mxu0 0.0
    %173 = vmatpush1.msra.mxu0 %v128
    %174 = vmatprep.subr.mxu0 0.0
    %175 = vmatpush1.msra.mxu0 %v127
    %176 = vmatprep.subr.mxu0 0.0
    %177 = vmatpush1.msra.mxu0 %v126
    %178 = vmatprep.subr.mxu0 0.0
    %179 = vmatpush1.msra.mxu0 %v125
    %180 = vmatprep.subr.mxu0 0.0
    %181 = vmatpush2.msra.mxu0 0.0
    %182 = vmatprep.subr.mxu0 0.0
    %183 = vmatpush2.msra.mxu0 0.0
    %184 = vmatprep.subr.mxu0 0.0
    %185 = vmatpush2.msra.mxu0 0.0
    %186 = vmatprep.subr.mxu0 0.0
    %187 = vmatpush2.msra.mxu0 0.0
    %188 = vmatprep.subr.mxu0 0.0
    %189 = vmatpush2.msra.mxu0 0.0
    %190 = vmatprep.subr.mxu0 0.0
    %191 = vmatpush2.msra.mxu0 0.0
    %192 = vmatprep.subr.mxu0 0.0
    %193 = vmatpush2.msra.mxu0 0.0
    %194 = vmatprep.subr.mxu0 0.0
    %195 = vmatpush2.msra.mxu0 0.0
    %196 = vmatprep.subr.mxu0 0.0
    %197 = vmatpush2.msra.mxu0 0.0
    %198 = vmatprep.subr.mxu0 0.0
    %199 = vmatpush2.msra.mxu0 0.0
    %200 = vmatprep.subr.mxu0 0.0
    %201 = vmatpush2.msra.mxu0 0.0
    %202 = vmatprep.subr.mxu0 0.0
    %203 = vmatpush2.msra.mxu0 0.0
    %204 = vmatprep.subr.mxu0 0.0
    %205 = vmatpush2.msra.mxu0 0.0
    %206 = vmatprep.subr.mxu0 0.0
    %207 = vmatpush2.msra.mxu0 0.0
    %208 = vmatprep.subr.mxu0 0.0
    %209 = vmatpush2.msra.mxu0 0.0
    %210 = vmatprep.subr.mxu0 0.0
    %211 = vmatpush2.msra.mxu0 0.0
    %212 = vmatprep.mubr.f32.mxu0 0.0
    %213 = vmatmul.mubr.f32.gmra.mxu0 %v123
    %v214 = vpop.f32.mrf.mxu0
    %v215 = vadd.f32 %v147, %v214
    %v216 = vpop.f32.mrf.mxu0
    %217 = vmatprep.mubr.f32.mxu0 0.0
    %218 = vmatmul.mubr.f32.gmra.mxu0 %v124
    %v219 = vpop.f32.mrf.mxu0
    %v220 = vadd.f32 %v147, %v219
    %v221 = vpop.f32.mrf.mxu0
    %222 = vdwg.mxu0
    %223 = vadd.xlane.f32.xlu0 %v215
    %v224 = vpop.xlane.xlu0 %223
    %225 = vadd.xlane.f32.xlu0 %v220
    %v226 = vpop.xlane.xlu0 %225
    %v227 = vmul.f32 %v215, %v215
    %v228 = vmul.f32 %v220, %v220
    %229 = vadd.xlane.f32.xlu0 %v227
    %v230 = vpop.xlane.xlu0 %229
    %231 = vadd.xlane.f32.xlu0 %v228
    %v232 = vpop.xlane.xlu0 %231
    %v233 = vmul.f32 %v224, 0.03125
    %v234 = vmul.f32 %v226, 0.03125
    %v235 = vmul.f32 %v230, 0.03125
    %v236 = vmul.f32 %v232, 0.03125
    %v237 = vmul.f32 %v233, %v233
    %v238 = vmul.f32 %v234, %v234
    %v239 = vsub.f32 %v235, %v237
    %v240 = vsub.f32 %v236, %v238
    %v241 = vadd.f32 %v239, 1e-05
    %v242 = vadd.f32 %v240, 1e-05
    %v243 = vrsqrt.pop %v241
    %v244 = vrsqrt.pop %v242
    %v245 = vsub.f32 %v215, %v233
    %v246 = vsub.f32 %v220, %v234
    %v247 = vmul.f32 %v245, %v243
    %v248 = vmul.f32 %v246, %v244
    %v249 = vlaneseq
    %v250 = vshrl.u32 %v249, 7
    %v251 = vsub.s32 0, %v250
    %v252 = vrot.slane %v142, %v251
    %v253 = vmul.f32 %v247, %v252
    %v254 = vmul.f32 %v248, %v252
    %v255 = vlaneseq
    %v256 = vshrl.u32 %v255, 7
    %v257 = vsub.s32 0, %v256
    %v258 = vrot.slane %v143, %v257
    %v259 = vadd.f32 %v253, %v258
    %v260 = vadd.f32 %v254, %v258
    %261 = vst [vmem:[#allocation2] sm:$0xff] %v259
    %262 = vst [vmem:[#allocation2 + $0x8] sm:$0xff] %v260
    // Predicated region
    $region22: #{_recurrent_block_impl.1} parent=1 // pred_check
      _
    $region23: #{_recurrent_block_impl.1} parent=1 // pred_check_branch
      %264 = sbr.rel (0) target = $region25
    $region24: #{_recurrent_block_impl.1} parent=1 // pred_region
      %s266 = ssub.s32 256, 256
      %267 = vsyncadd [#allocation3], %s266
      %s268 = sshll.u32 [#allocation2], 4
      %s269 = int_to_ptr.vmem [resolvable:$true] %s268
      %274 = dma.vmem_to_hbm [thread:$0]  %s269, 256, %s5, [#allocation3], 128, 128, 8
    $region25: #{_recurrent_block_impl.1} parent=1 // pred_fallthru
      _
    // Predicated region
    $region26: #{_recurrent_block_impl.1} parent=1 // pred_check
      _
    $region27: #{_recurrent_block_impl.1} parent=1 // pred_check_branch
      %276 = sbr.rel (0) target = $region29
    $region28: #{_recurrent_block_impl.1} parent=1 // pred_region
      %277 = dma.done [#allocation3], 256
    $region29: #{_recurrent_block_impl.1} parent=1 // pred_fallthru
      _
    %278 = vsyncpa [#allocation3], 1

</llo_original>
